<compile_context>
chip_gen: v7x
topology: tpu7x:2x2x1
jax: 0.10.0
libtpu: 0.0.40
codegen_flags: <defaults>
</compile_context>

<pallas_src>
import jax
import jax.numpy as jnp
from jax import lax
from jax.experimental import pallas as pl
from jax.experimental.pallas import tpu as pltpu


def _round_up(x, m):
    return (x + m - 1) // m * m


def _channel_block(cin, cout):
    """# of input channels processed per inner step so operands span >= 8
    sublane rows even when Cout < 8 (full vreg occupancy)."""
    if cout >= 8:
        return 1
    k = max(1, 8 // cout)
    while k > 1 and cin % k != 0:
        k -= 1
    return k


def _align8(idx, step_mult):
    """Alignment hint for dynamic sublane offsets (fori_loop path only)."""
    if isinstance(idx, int) or step_mult % 8 != 0:
        return idx
    return pl.multiple_of(idx, 8)


# ----------------------------------------------------------------------------
# Pallas kernel: complex mode-mixing for one (corner, M-tile) grid step.
#   out[b*Cout + o, m] = sum_i x[b,i,m] * w[i,o,m]          (complex multiply)
# Ref layouts (re/im fused on axis 1):
#   x_ref: (1, 2, x_rows, Mt)   x_rows = B*Cin*Cout (pre-replicated) or B*Cin
#   w_ref: (1, 2, Cin*Cout, Mt) row i*Cout + o  = w[i, o]
#   o_ref: (1, 2, B*Cout,  Mt)  row b*Cout + o
# ----------------------------------------------------------------------------
def _make_spectral_kernel(B, Cin, Cout, K, x_replicated):
    steps = Cin // K
    KC = K * Cout

    def kernel(x_ref, w_ref, o_ref):
        Mt = x_ref.shape[-1]

        def step(b, s, acc_r, acc_i):
            # Per-iteration ref reads: live set stays O(KC * Mt).
            if x_replicated:
                xs = _align8((b * Cin + s * K) * Cout, KC)
                xr = x_ref[0, 0, pl.ds(xs, KC), :]
                xi = x_ref[0, 1, pl.ds(xs, KC), :]
            else:
                row = b * Cin + s                     # K == 1 (Cout >= 8)
                xr = jnp.broadcast_to(x_ref[0, 0, pl.ds(row, 1), :], (KC, Mt))
                xi = jnp.broadcast_to(x_ref[0, 1, pl.ds(row, 1), :], (KC, Mt))
            ws = _align8(s * KC, KC)
            wr = w_ref[0, 0, pl.ds(ws, KC), :].astype(jnp.float32)
            wi = w_ref[0, 1, pl.ds(ws, KC), :].astype(jnp.float32)
            # Plain 4-mul / 4-add complex multiply-accumulate (VALU-optimal).
            acc_r = acc_r + (xr * wr - xi * wi)
            acc_i = acc_i + (xr * wi + xi * wr)
            return acc_r, acc_i

        # Small-Cout case: defer stores so each output plane is written with
        # one full-sublane, unmasked store.
        defer_store = (Cout % 8 != 0) and ((B * Cout) % 8 == 0)
        outs_r, outs_i = [], []

        for b in range(B):                            # batch: small & static
            zero = jnp.zeros((KC, Mt), jnp.float32)
            if steps <= 8:
                acc_r, acc_i = zero, zero
                for s in range(steps):                # short: static unroll
                    acc_r, acc_i = step(b, s, acc_r, acc_i)
            else:                                     # long: bounded live set
                acc_r, acc_i = lax.fori_loop(
                    0, steps, lambda s, c: step(b, s, c[0], c[1]),
                    (zero, zero), unroll=8)

            # Collapse the K channel sub-blocks (K - 1 adds, once per batch).
            out_r, out_i = acc_r[:Cout], acc_i[:Cout]
            for k in range(1, K):
                out_r = out_r + acc_r[k * Cout:(k + 1) * Cout]
                out_i = out_i + acc_i[k * Cout:(k + 1) * Cout]

            if defer_store:
                outs_r.append(out_r)
                outs_i.append(out_i)
            else:
                o_ref[0, 0, pl.ds(b * Cout, Cout), :] = out_r
                o_ref[0, 1, pl.ds(b * Cout, Cout), :] = out_i

        if defer_store:
            o_ref[0, 0] = jnp.concatenate(outs_r, axis=0)
            o_ref[0, 1] = jnp.concatenate(outs_i, axis=0)

    return kernel


def _choose_m_tile(Mp, B, Cin, Cout, K, x_rows, vmem_budget_bytes=8 << 20):
    """M tile: multiple of 128 dividing Mp, capped so (a) the two f32
    accumulators stay <= ~64 KiB (in vregs, no spills) and (b) the
    double-buffered, sublane-padded in/out blocks stay under ~8 MiB
    (v7x-safe)."""
    kc = max(8, K * Cout)
    acc_cap = max(128, ((64 << 10) // (2 * 4 * kc)) // 128 * 128)
    rows_padded = (_round_up(x_rows, 8) + _round_up(Cin * Cout, 8)
                   + _round_up(B * Cout, 8))
    per_lane = 2 * 2 * 4 * rows_padded        # dbl-buffer * (re+im) * f32
    vmem_cap = max(128, (vmem_budget_bytes // per_lane) // 128 * 128)
    mt = min(512, acc_cap, vmem_cap, Mp)
    while Mp % mt != 0:                        # 128 always divides Mp
        mt -= 128
    return mt


def _spectral_mul_pallas(x_ri, w_ri, B, Cin, Cout, K):
    """x_ri: (4, 2, x_rows, Mp) f32; w_ri: (4, 2, Cin*Cout, Mp).
    Returns (4, 2, B*Cout, Mp) f32."""
    _, _, x_rows, Mp = x_ri.shape
    Mt = _choose_m_tile(Mp, B, Cin, Cout, K, x_rows)
    kernel = _make_spectral_kernel(B, Cin, Cout, K, x_replicated=(K > 1))

    x_spec = pl.BlockSpec((1, 2, x_rows, Mt), lambda c, m: (c, 0, 0, m))
    w_spec = pl.BlockSpec((1, 2, Cin * Cout, Mt), lambda c, m: (c, 0, 0, m))
    o_spec = pl.BlockSpec((1, 2, B * Cout, Mt), lambda c, m: (c, 0, 0, m))

    rows_padded = (_round_up(x_rows, 8) + _round_up(Cin * Cout, 8)
                   + _round_up(B * Cout, 8))
    footprint = 2 * 2 * 4 * Mt * rows_padded   # double-buffered blocks, f32
    vmem_limit = int(min(96 << 20, max(2 * footprint + (4 << 20), 16 << 20)))

    cost = pl.CostEstimate(
        flops=8 * 4 * B * Cin * Cout * Mp,     # 4 mul + 4 add per complex MAC
        transcendentals=0,
        bytes_accessed=4 * Mp * 2 * (x_ri.dtype.itemsize * x_rows
                                     + w_ri.dtype.itemsize * Cin * Cout
                                     + 4 * B * Cout),
    )

    return pl.pallas_call(
        kernel,
        out_shape=jax.ShapeDtypeStruct((4, 2, B * Cout, Mp), jnp.float32),
        grid=(4, Mp // Mt),
        in_specs=[x_spec, w_spec],
        out_specs=o_spec,
        compiler_params=pltpu.CompilerParams(
            dimension_semantics=("parallel", "parallel"),
            vmem_limit_bytes=vmem_limit,
        ),
        cost_estimate=cost,
    )(x_ri, w_ri)


# ----------------------------------------------------------------------------
# Weight packing (run once, OUTSIDE the per-forward path)
# ----------------------------------------------------------------------------
def pack_spectral_weights(weights, weight_dtype=jnp.float32):
    """Pack the 4 complex (Cin, Cout, m1, m2, m3) weights: stack corners,
    flatten modes, split re/im, lane-pad to a multiple of 128.
    weight_dtype=jnp.bfloat16 halves weight HBM traffic (native on v6e/v7x;
    still an HBM win on v5e at the cost of VALU upcasts)."""
    w = jnp.stack(list(weights), axis=0)            # (4,Cin,Cout,m1,m2,m3) c64
    _, Cin, Cout, m1, m2, m3 = w.shape
    M = m1 * m2 * m3
    Mp = _round_up(M, 128)
    w = w.reshape(4, Cin * Cout, M)                 # row = i*Cout + o
    w_ri = jnp.stack([jnp.real(w), jnp.imag(w)], axis=1).astype(weight_dtype)
    return jnp.pad(w_ri, ((0, 0), (0, 0), (0, 0), (0, Mp - M)))


# ----------------------------------------------------------------------------
# Full SpectralConv3d forward (FFT glue in plain JAX, mode-mixing in Pallas)
# ----------------------------------------------------------------------------
def spectral_conv3d_forward(x, w_packed, modes1, modes2, modes3):
    """x: (B, Cin, D, H, W) float32.  w_packed: from pack_spectral_weights."""
    B, Cin, D, H, W = x.shape
    m1, m2, m3 = modes1, modes2, modes3
    Wf = W // 2 + 1
    M = m1 * m2 * m3
    Mp = w_packed.shape[-1]
    assert w_packed.shape[0] == 4 and w_packed.shape[1] == 2
    assert w_packed.shape[2] % Cin == 0
    Cout = w_packed.shape[2] // Cin
    assert Mp == _round_up(M, 128)
    assert m1 <= D and m2 <= H and m3 <= Wf, "modes exceed rFFT extents"
    # NOTE: if 2*m1 > D or 2*m2 > H the corner windows overlap; the sequential
    # .set() scatter below reproduces PyTorch's later-write-wins behavior.

    x_ft = jnp.fft.rfftn(x, axes=(-3, -2, -1))       # (B,Cin,D,H,Wf) c64

    # 4 retained mode corners (same order as the PyTorch module).
    corners = jnp.stack(
        [x_ft[:, :, :m1, :m2, :m3],
         x_ft[:, :, -m1:, :m2, :m3],
         x_ft[:, :, :m1, -m2:, :m3],
         x_ft[:, :, -m1:, -m2:, :m3]],
        axis=0,
    ).reshape(4, B, Cin, M)

    x_ri = jnp.stack([jnp.real(corners), jnp.imag(corners)],
                     axis=1).astype(jnp.float32)      # (4,2,B,Cin,M)

    K = _channel_block(Cin, Cout)
    if K > 1:
        # Small-Cout path: replicate each x row across Cout so per-step kernel
        # reads are aligned, contiguous, full-sublane (K*Cout >= 8) blocks.
        x_ri = jnp.broadcast_to(x_ri[:, :, :, :, None, :],
                                (4, 2, B, Cin, Cout, M))
        x_rows = B * Cin * Cout
    else:
        x_rows = B * Cin
    x_ri = x_ri.reshape(4, 2, x_rows, M)
    x_ri = jnp.pad(x_ri, ((0, 0), (0, 0), (0, 0), (0, Mp - M)))

    out_ri = _spectral_mul_pallas(x_ri, w_packed, B, Cin, Cout, K)

    out_c = (out_ri[:, 0, :, :M] + 1j * out_ri[:, 1, :, :M]).astype(jnp.complex64)
    out_c = out_c.reshape(4, B, Cout, m1, m2, m3)

    # Scatter the 4 corners into the full (zero) spectrum, then inverse rFFT.
    out_ft = jnp.zeros((B, Cout, D, H, Wf), dtype=jnp.complex64)
    out_ft = out_ft.at[:, :, :m1, :m2, :m3].set(out_c[0])
    out_ft = out_ft.at[:, :, D - m1:, :m2, :m3].set(out_c[1])
    out_ft = out_ft.at[:, :, :m1, H - m2:, :m3].set(out_c[2])
    out_ft = out_ft.at[:, :, D - m1:, H - m2:, :m3].set(out_c[3])

    return jnp.fft.irfftn(out_ft, s=(D, H, W), axes=(-3, -2, -1)).astype(jnp.float32)


# ----------------------------------------------------------------------------
# Reference (pure JAX) for a correctness check
# ----------------------------------------------------------------------------
def spectral_conv3d_reference(x, weights, m1, m2, m3):
    B, Cin, D, H, W = x.shape
    Cout = weights[0].shape[1]
    x_ft = jnp.fft.rfftn(x, axes=(-3, -2, -1))
    mul = lambda a, w: jnp.einsum('bixyz,ioxyz->boxyz', a, w)
    out_ft = jnp.zeros((B, Cout, D, H, W // 2 + 1), dtype=jnp.complex64)
    out_ft = out_ft.at[:, :, :m1, :m2, :m3].set(mul(x_ft[:, :, :m1, :m2, :m3], weights[0]))
    out_ft = out_ft.at[:, :, D - m1:, :m2, :m3].set(mul(x_ft[:, :, -m1:, :m2, :m3], weights[1]))
    out_ft = out_ft.at[:, :, :m1, H - m2:, :m3].set(mul(x_ft[:, :, :m1, -m2:, :m3], weights[2]))
    out_ft = out_ft.at[:, :, D - m1:, H - m2:, :m3].set(mul(x_ft[:, :, -m1:, -m2:, :m3], weights[3]))
    return jnp.fft.irfftn(out_ft, s=(D, H, W), axes=(-3, -2, -1)).astype(jnp.float32)


if __name__ == "__main__":
    # Small shapes consistent with the module
    B, Cin, Cout = 2, 4, 4
    m1 = m2 = m3 = 4
    D, H, W = 16, 16, 8

    key = jax.random.PRNGKey(0)
    kx, *kw = jax.random.split(key, 9)

    x = jax.random.normal(kx, (B, Cin, D, H, W), dtype=jnp.float32)

    # Weight init mirroring torch: scale * rand(cfloat)
    scale = 1.0 / (Cin * Cout)
    weights = []
    for i in range(4):
        re = jax.random.uniform(kw[2 * i], (Cin, Cout, m1, m2, m3), dtype=jnp.float32)
        im = jax.random.uniform(kw[2 * i + 1], (Cin, Cout, m1, m2, m3), dtype=jnp.float32)
        weights.append((scale * (re + 1j * im)).astype(jnp.complex64))
    weights = tuple(weights)

    # Pack the weights ONCE, outside the per-forward path (the module's
    # parameters are static across calls).
    w_packed = jax.block_until_ready(pack_spectral_weights(weights))

    fwd = jax.jit(spectral_conv3d_forward, static_argnums=(2, 3, 4))
    out = jax.block_until_ready(fwd(x, w_packed, m1, m2, m3))

    ref = jax.block_until_ready(spectral_conv3d_reference(x, weights, m1, m2, m3))

    assert out.shape == (B, Cout, D, H, W), out.shape
    assert out.dtype == jnp.float32, out.dtype
    assert jnp.allclose(out, ref, atol=1e-4, rtol=1e-4), float(jnp.max(jnp.abs(out - ref)))

    print("KERNEL_OK")
</pallas_src>

<mosaic_0001>
module attributes {stable_mosaic.version = 11 : i64} {
  func.func @kernel(%arg0: i32, %arg1: i32, %arg2: memref<1x2x32x128xf32, #tpu.memory_space<vmem>>, %arg3: memref<1x2x16x128xf32, #tpu.memory_space<vmem>>, %arg4: memref<1x2x8x128xf32, #tpu.memory_space<vmem>>) attributes {dimension_semantics = [#tpu.dimension_semantics<parallel>, #tpu.dimension_semantics<parallel>], iteration_bounds = array<i64: 4, 1>, scalar_prefetch = 0 : i64, scratch_operands = 0 : i64, tpu.core_type = #tpu.core_type<tc>, window_params = [{transform_indices = @transform_0, window_bounds = array<i64: 1, 2, 32, 128>}, {transform_indices = @transform_1, window_bounds = array<i64: 1, 2, 16, 128>}, {transform_indices = @transform_2, window_bounds = array<i64: 1, 2, 8, 128>}]} {
    %cst = arith.constant 0.000000e+00 : f32
    %0 = vector.broadcast %cst : f32 to vector<8x128xf32>
    %c0 = arith.constant 0 : index
    %c0_0 = arith.constant 0 : index
    %c0_1 = arith.constant 0 : index
    %c0_2 = arith.constant 0 : index
    %1 = vector.load %arg2[%c0, %c0_0, %c0_1, %c0_2] : memref<1x2x32x128xf32, #tpu.memory_space<vmem>>, vector<1x1x8x128xf32>
    %2 = vector.shape_cast %1 : vector<1x1x8x128xf32> to vector<8x128xf32>
    %c0_3 = arith.constant 0 : index
    %c1 = arith.constant 1 : index
    %c0_4 = arith.constant 0 : index
    %c0_5 = arith.constant 0 : index
    %3 = vector.load %arg2[%c0_3, %c1, %c0_4, %c0_5] : memref<1x2x32x128xf32, #tpu.memory_space<vmem>>, vector<1x1x8x128xf32>
    %4 = vector.shape_cast %3 : vector<1x1x8x128xf32> to vector<8x128xf32>
    %c0_6 = arith.constant 0 : index
    %c0_7 = arith.constant 0 : index
    %c0_8 = arith.constant 0 : index
    %c0_9 = arith.constant 0 : index
    %5 = vector.load %arg3[%c0_6, %c0_7, %c0_8, %c0_9] : memref<1x2x16x128xf32, #tpu.memory_space<vmem>>, vector<1x1x8x128xf32>
    %6 = vector.shape_cast %5 : vector<1x1x8x128xf32> to vector<8x128xf32>
    %c0_10 = arith.constant 0 : index
    %c1_11 = arith.constant 1 : index
    %c0_12 = arith.constant 0 : index
    %c0_13 = arith.constant 0 : index
    %7 = vector.load %arg3[%c0_10, %c1_11, %c0_12, %c0_13] : memref<1x2x16x128xf32, #tpu.memory_space<vmem>>, vector<1x1x8x128xf32>
    %8 = vector.shape_cast %7 : vector<1x1x8x128xf32> to vector<8x128xf32>
    %9 = arith.mulf %2, %6 : vector<8x128xf32>
    %10 = arith.mulf %4, %8 : vector<8x128xf32>
    %11 = arith.subf %9, %10 : vector<8x128xf32>
    %12 = arith.addf %0, %11 : vector<8x128xf32>
    %13 = arith.mulf %2, %8 : vector<8x128xf32>
    %14 = arith.mulf %4, %6 : vector<8x128xf32>
    %15 = arith.addf %13, %14 : vector<8x128xf32>
    %16 = arith.addf %0, %15 : vector<8x128xf32>
    %c0_14 = arith.constant 0 : index
    %c0_15 = arith.constant 0 : index
    %c8 = arith.constant 8 : index
    %c0_16 = arith.constant 0 : index
    %17 = vector.load %arg2[%c0_14, %c0_15, %c8, %c0_16] : memref<1x2x32x128xf32, #tpu.memory_space<vmem>>, vector<1x1x8x128xf32>
    %18 = vector.shape_cast %17 : vector<1x1x8x128xf32> to vector<8x128xf32>
    %c0_17 = arith.constant 0 : index
    %c1_18 = arith.constant 1 : index
    %c8_19 = arith.constant 8 : index
    %c0_20 = arith.constant 0 : index
    %19 = vector.load %arg2[%c0_17, %c1_18, %c8_19, %c0_20] : memref<1x2x32x128xf32, #tpu.memory_space<vmem>>, vector<1x1x8x128xf32>
    %20 = vector.shape_cast %19 : vector<1x1x8x128xf32> to vector<8x128xf32>
    %c0_21 = arith.constant 0 : index
    %c0_22 = arith.constant 0 : index
    %c8_23 = arith.constant 8 : index
    %c0_24 = arith.constant 0 : index
    %21 = vector.load %arg3[%c0_21, %c0_22, %c8_23, %c0_24] : memref<1x2x16x128xf32, #tpu.memory_space<vmem>>, vector<1x1x8x128xf32>
    %22 = vector.shape_cast %21 : vector<1x1x8x128xf32> to vector<8x128xf32>
    %c0_25 = arith.constant 0 : index
    %c1_26 = arith.constant 1 : index
    %c8_27 = arith.constant 8 : index
    %c0_28 = arith.constant 0 : index
    %23 = vector.load %arg3[%c0_25, %c1_26, %c8_27, %c0_28] : memref<1x2x16x128xf32, #tpu.memory_space<vmem>>, vector<1x1x8x128xf32>
    %24 = vector.shape_cast %23 : vector<1x1x8x128xf32> to vector<8x128xf32>
    %25 = arith.mulf %18, %22 : vector<8x128xf32>
    %26 = arith.mulf %20, %24 : vector<8x128xf32>
    %27 = arith.subf %25, %26 : vector<8x128xf32>
    %28 = arith.addf %12, %27 : vector<8x128xf32>
    %29 = arith.mulf %18, %24 : vector<8x128xf32>
    %30 = arith.mulf %20, %22 : vector<8x128xf32>
    %31 = arith.addf %29, %30 : vector<8x128xf32>
    %32 = arith.addf %16, %31 : vector<8x128xf32>
    %33 = vector.extract_strided_slice %28 {offsets = [0, 0], sizes = [4, 128], strides = [1, 1]} : vector<8x128xf32> to vector<4x128xf32>
    %34 = vector.extract_strided_slice %32 {offsets = [0, 0], sizes = [4, 128], strides = [1, 1]} : vector<8x128xf32> to vector<4x128xf32>
    %35 = vector.extract_strided_slice %28 {offsets = [4, 0], sizes = [4, 128], strides = [1, 1]} : vector<8x128xf32> to vector<4x128xf32>
    %36 = arith.addf %33, %35 : vector<4x128xf32>
    %37 = vector.extract_strided_slice %32 {offsets = [4, 0], sizes = [4, 128], strides = [1, 1]} : vector<8x128xf32> to vector<4x128xf32>
    %38 = arith.addf %34, %37 : vector<4x128xf32>
    %cst_29 = arith.constant 0.000000e+00 : f32
    %39 = vector.broadcast %cst_29 : f32 to vector<8x128xf32>
    %c0_30 = arith.constant 0 : index
    %c0_31 = arith.constant 0 : index
    %c16 = arith.constant 16 : index
    %c0_32 = arith.constant 0 : index
    %40 = vector.load %arg2[%c0_30, %c0_31, %c16, %c0_32] : memref<1x2x32x128xf32, #tpu.memory_space<vmem>>, vector<1x1x8x128xf32>
    %41 = vector.shape_cast %40 : vector<1x1x8x128xf32> to vector<8x128xf32>
    %c0_33 = arith.constant 0 : index
    %c1_34 = arith.constant 1 : index
    %c16_35 = arith.constant 16 : index
    %c0_36 = arith.constant 0 : index
    %42 = vector.load %arg2[%c0_33, %c1_34, %c16_35, %c0_36] : memref<1x2x32x128xf32, #tpu.memory_space<vmem>>, vector<1x1x8x128xf32>
    %43 = vector.shape_cast %42 : vector<1x1x8x128xf32> to vector<8x128xf32>
    %c0_37 = arith.constant 0 : index
    %c0_38 = arith.constant 0 : index
    %c0_39 = arith.constant 0 : index
    %c0_40 = arith.constant 0 : index
    %44 = vector.load %arg3[%c0_37, %c0_38, %c0_39, %c0_40] : memref<1x2x16x128xf32, #tpu.memory_space<vmem>>, vector<1x1x8x128xf32>
    %45 = vector.shape_cast %44 : vector<1x1x8x128xf32> to vector<8x128xf32>
    %c0_41 = arith.constant 0 : index
    %c1_42 = arith.constant 1 : index
    %c0_43 = arith.constant 0 : index
    %c0_44 = arith.constant 0 : index
    %46 = vector.load %arg3[%c0_41, %c1_42, %c0_43, %c0_44] : memref<1x2x16x128xf32, #tpu.memory_space<vmem>>, vector<1x1x8x128xf32>
    %47 = vector.shape_cast %46 : vector<1x1x8x128xf32> to vector<8x128xf32>
    %48 = arith.mulf %41, %45 : vector<8x128xf32>
    %49 = arith.mulf %43, %47 : vector<8x128xf32>
    %50 = arith.subf %48, %49 : vector<8x128xf32>
    %51 = arith.addf %39, %50 : vector<8x128xf32>
    %52 = arith.mulf %41, %47 : vector<8x128xf32>
    %53 = arith.mulf %43, %45 : vector<8x128xf32>
    %54 = arith.addf %52, %53 : vector<8x128xf32>
    %55 = arith.addf %39, %54 : vector<8x128xf32>
    %c0_45 = arith.constant 0 : index
    %c0_46 = arith.constant 0 : index
    %c24 = arith.constant 24 : index
    %c0_47 = arith.constant 0 : index
    %56 = vector.load %arg2[%c0_45, %c0_46, %c24, %c0_47] : memref<1x2x32x128xf32, #tpu.memory_space<vmem>>, vector<1x1x8x128xf32>
    %57 = vector.shape_cast %56 : vector<1x1x8x128xf32> to vector<8x128xf32>
    %c0_48 = arith.constant 0 : index
    %c1_49 = arith.constant 1 : index
    %c24_50 = arith.constant 24 : index
    %c0_51 = arith.constant 0 : index
    %58 = vector.load %arg2[%c0_48, %c1_49, %c24_50, %c0_51] : memref<1x2x32x128xf32, #tpu.memory_space<vmem>>, vector<1x1x8x128xf32>
    %59 = vector.shape_cast %58 : vector<1x1x8x128xf32> to vector<8x128xf32>
    %c0_52 = arith.constant 0 : index
    %c0_53 = arith.constant 0 : index
    %c8_54 = arith.constant 8 : index
    %c0_55 = arith.constant 0 : index
    %60 = vector.load %arg3[%c0_52, %c0_53, %c8_54, %c0_55] : memref<1x2x16x128xf32, #tpu.memory_space<vmem>>, vector<1x1x8x128xf32>
    %61 = vector.shape_cast %60 : vector<1x1x8x128xf32> to vector<8x128xf32>
    %c0_56 = arith.constant 0 : index
    %c1_57 = arith.constant 1 : index
    %c8_58 = arith.constant 8 : index
    %c0_59 = arith.constant 0 : index
    %62 = vector.load %arg3[%c0_56, %c1_57, %c8_58, %c0_59] : memref<1x2x16x128xf32, #tpu.memory_space<vmem>>, vector<1x1x8x128xf32>
    %63 = vector.shape_cast %62 : vector<1x1x8x128xf32> to vector<8x128xf32>
    %64 = arith.mulf %57, %61 : vector<8x128xf32>
    %65 = arith.mulf %59, %63 : vector<8x128xf32>
    %66 = arith.subf %64, %65 : vector<8x128xf32>
    %67 = arith.addf %51, %66 : vector<8x128xf32>
    %68 = arith.mulf %57, %63 : vector<8x128xf32>
    %69 = arith.mulf %59, %61 : vector<8x128xf32>
    %70 = arith.addf %68, %69 : vector<8x128xf32>
    %71 = arith.addf %55, %70 : vector<8x128xf32>
    %72 = vector.extract_strided_slice %67 {offsets = [0, 0], sizes = [4, 128], strides = [1, 1]} : vector<8x128xf32> to vector<4x128xf32>
    %73 = vector.extract_strided_slice %71 {offsets = [0, 0], sizes = [4, 128], strides = [1, 1]} : vector<8x128xf32> to vector<4x128xf32>
    %74 = vector.extract_strided_slice %67 {offsets = [4, 0], sizes = [4, 128], strides = [1, 1]} : vector<8x128xf32> to vector<4x128xf32>
    %75 = arith.addf %72, %74 : vector<4x128xf32>
    %76 = vector.extract_strided_slice %71 {offsets = [4, 0], sizes = [4, 128], strides = [1, 1]} : vector<8x128xf32> to vector<4x128xf32>
    %77 = arith.addf %73, %76 : vector<4x128xf32>
    %78 = tpu.concatenate %36, %75 in 0 : vector<4x128xf32>, vector<4x128xf32> -> vector<8x128xf32>
    %c0_60 = arith.constant 0 : index
    %c0_61 = arith.constant 0 : index
    %c0_62 = arith.constant 0 : index
    %c0_63 = arith.constant 0 : index
    %79 = vector.load %arg4[%c0_60, %c0_61, %c0_62, %c0_63] : memref<1x2x8x128xf32, #tpu.memory_space<vmem>>, vector<1x1x8x128xf32>
    %80 = vector.shape_cast %79 : vector<1x1x8x128xf32> to vector<8x128xf32>
    %81 = vector.shape_cast %78 : vector<8x128xf32> to vector<1x1x8x128xf32>
    tpu.vector_store %arg4[%c0_60, %c0_61, %c0_62, %c0_63], %81 {strides = array<i32>} : memref<1x2x8x128xf32, #tpu.memory_space<vmem>>, vector<1x1x8x128xf32>,
    %82 = tpu.concatenate %38, %77 in 0 : vector<4x128xf32>, vector<4x128xf32> -> vector<8x128xf32>
    %c0_64 = arith.constant 0 : index
    %c1_65 = arith.constant 1 : index
    %c0_66 = arith.constant 0 : index
    %c0_67 = arith.constant 0 : index
    %83 = vector.load %arg4[%c0_64, %c1_65, %c0_66, %c0_67] : memref<1x2x8x128xf32, #tpu.memory_space<vmem>>, vector<1x1x8x128xf32>
    %84 = vector.shape_cast %83 : vector<1x1x8x128xf32> to vector<8x128xf32>
    %85 = vector.shape_cast %82 : vector<8x128xf32> to vector<1x1x8x128xf32>
    tpu.vector_store %arg4[%c0_64, %c1_65, %c0_66, %c0_67], %85 {strides = array<i32>} : memref<1x2x8x128xf32, #tpu.memory_space<vmem>>, vector<1x1x8x128xf32>,
    return
  }
  func.func @transform_0(%arg0: i32, %arg1: i32) -> (i32, i32, i32, i32) {
    %c0_i32 = arith.constant 0 : i32
    %c0_i32_0 = arith.constant 0 : i32
    %c0_i32_1 = arith.constant 0 : i32
    return %arg0, %c0_i32, %c0_i32_0, %arg1 : i32, i32, i32, i32
  }
  func.func @transform_1(%arg0: i32, %arg1: i32) -> (i32, i32, i32, i32) {
    %c0_i32 = arith.constant 0 : i32
    %c0_i32_0 = arith.constant 0 : i32
    %c0_i32_1 = arith.constant 0 : i32
    return %arg0, %c0_i32, %c0_i32_0, %arg1 : i32, i32, i32, i32
  }
  func.func @transform_2(%arg0: i32, %arg1: i32) -> (i32, i32, i32, i32) {
    %c0_i32 = arith.constant 0 : i32
    %c0_i32_0 = arith.constant 0 : i32
    %c0_i32_1 = arith.constant 0 : i32
    return %arg0, %c0_i32, %c0_i32_0, %arg1 : i32, i32, i32, i32
  }
}

</mosaic_0001>

<llo_original>
// kernel: spectral_conv3d_forward.1
$region0: #{spectral_conv3d_forward.1}
  #allocation0 [shape = 'u32[]', space=smem, size = 0x4, offset = 0x4, fixed_abs, tag = 'smem constant byte address 0x4 - core index']
  #allocation1 [shape = 'u32[144,128]{1,0:T(1,128)}', space=vmem, size = 0x12000, scoped, tag = 'internal scratch']
  %s0 = inlined_call_operand.vmem [shape: f32[4,2,32,128], index: 0, kind: input, shape index: {}]
  %s1 = inlined_call_operand.vmem [shape: f32[4,2,16,128], index: 1, kind: input, shape index: {}]
  %s2 = inlined_call_operand.vmem [shape: f32[4,2,8,128], index: 2, kind: output, shape index: {}]
  %s3 = sld [smem:[#allocation0]]
  $region41: #{spectral_conv3d_forward.1} parent=0
    _
  %s5 = ssub.s32 1, %s3
  %s6 = scalar_select 0, %s5, %s3
  loop: start=0, step=1, limit=6
  $region2: #{spectral_conv3d_forward.1} parent=0 // loop_pre_header
    _
  $region3: #{spectral_conv3d_forward.1} parent=0 // loop_header
    %s8 = sphi 0, %s12
    %p9 = scmp.ge.s32.totalorder %s8, 6
    %s15 = sphi 0, %s27
    %s16 = sphi 0, %s23
    %s17 = sphi 0, %s15
    %s18 = sphi 0, %s16
    %s19 = sphi 0, %s17
    %s20 = sphi 0, %s18
    %s32 = sphi 0, %s34
    %s35 = sphi 0, %s32
    %s36 = sphi 0, %s35
    %s52 = sphi 0, %s36
    %s60 = sphi 0, %s62
    %s63 = sphi 0, %s60
    %s64 = sphi 0, %s63
    %s80 = sphi 0, %s64
    %s88 = sphi 0, %s90
    %s91 = sphi 0, %s88
    %s92 = sphi 0, %s91
    %s108 = sphi 0, %s92
  $region4: #{spectral_conv3d_forward.1} parent=0 // loop_header_branch
    %11 = sbr.rel (%p9) target = $region8
  $region5: #{spectral_conv3d_forward.1} parent=0 // loop_body
    %s13 = ssub.s32 %s8, 1
    %s14 = ssub.s32 %s8, 2
    %s21 = sadd.s32 1, %s16
    %p22 = scmp.ge.s32.totalorder %s21, 1
    %s23 = scalar_select %p22, 0, %s21
    %s24 = sadd.s32 1, %s15
    %s25 = scalar_select %p22, %s24, %s15
    %p26 = scmp.ge.s32.totalorder %s25, 4
    %s27 = scalar_select %p26, 0, %s25
    %s28 = ssub.s32 %s15, %s27
    %s29 = ssub.s32 %s16, %s23
    %s30 = sor.u32 %s28, %s29
    %p31 = scmp.eq.s32.totalorder %s30, 0
    %s33 = sadd.s32 %s32, 1
    %s34 = scalar_select %p31, %s32, %s33
    %p37 = pneg %p31
    %p38 = scmp.eq.s32.totalorder %s8, 3
    %p39 = por %p37, %p38
    %p40 = scmp.ne.s32.totalorder %s32, %s35
    %p41 = scmp.eq.s32.totalorder %s8, 0
    %p42 = por %p40, %p41
    %p43 = scmp.ne.s32.totalorder %s32, %s35
    %p44 = scmp.eq.s32.totalorder %s13, 3
    %p45 = por %p43, %p44
    %p46 = scmp.ne.s32.totalorder %s35, %s36
    %p47 = scmp.eq.s32.totalorder %s13, 0
    %p48 = por %p46, %p47
    %p49 = scmp.ne.s32.totalorder %s35, %s36
    %p50 = scmp.eq.s32.totalorder %s14, 3
    %p51 = por %p49, %p50
    %p53 = scmp.ne.s32.totalorder %s36, %s52
    %p54 = scmp.eq.s32.totalorder %s14, 0
    %p55 = por %p53, %p54
    %s56 = ssub.s32 %s15, %s27
    %s57 = ssub.s32 %s16, %s23
    %s58 = sor.u32 %s56, %s57
    %p59 = scmp.eq.s32.totalorder %s58, 0
    %s61 = sadd.s32 %s60, 1
    %s62 = scalar_select %p59, %s60, %s61
    %p65 = pneg %p59
    %p66 = scmp.eq.s32.totalorder %s8, 3
    %p67 = por %p65, %p66
    %p68 = scmp.ne.s32.totalorder %s60, %s63
    %p69 = scmp.eq.s32.totalorder %s8, 0
    %p70 = por %p68, %p69
    %p71 = scmp.ne.s32.totalorder %s60, %s63
    %p72 = scmp.eq.s32.totalorder %s13, 3
    %p73 = por %p71, %p72
    %p74 = scmp.ne.s32.totalorder %s63, %s64
    %p75 = scmp.eq.s32.totalorder %s13, 0
    %p76 = por %p74, %p75
    %p77 = scmp.ne.s32.totalorder %s63, %s64
    %p78 = scmp.eq.s32.totalorder %s14, 3
    %p79 = por %p77, %p78
    %p81 = scmp.ne.s32.totalorder %s64, %s80
    %p82 = scmp.eq.s32.totalorder %s14, 0
    %p83 = por %p81, %p82
    %s84 = ssub.s32 %s15, %s27
    %s85 = ssub.s32 %s16, %s23
    %s86 = sor.u32 %s84, %s85
    %p87 = scmp.eq.s32.totalorder %s86, 0
    %s89 = sadd.s32 %s88, 1
    %s90 = scalar_select %p87, %s88, %s89
    %p93 = pneg %p87
    %p94 = scmp.eq.s32.totalorder %s8, 3
    %p95 = por %p93, %p94
    %p96 = scmp.ne.s32.totalorder %s88, %s91
    %p97 = scmp.eq.s32.totalorder %s8, 0
    %p98 = por %p96, %p97
    %p99 = scmp.ne.s32.totalorder %s88, %s91
    %p100 = scmp.eq.s32.totalorder %s13, 3
    %p101 = por %p99, %p100
    %p102 = scmp.ne.s32.totalorder %s91, %s92
    %p103 = scmp.eq.s32.totalorder %s13, 0
    %p104 = por %p102, %p103
    %p105 = scmp.ne.s32.totalorder %s91, %s92
    %p106 = scmp.eq.s32.totalorder %s14, 3
    %p107 = por %p105, %p106
    %p109 = scmp.ne.s32.totalorder %s92, %s108
    %p110 = scmp.eq.s32.totalorder %s14, 0
    %p111 = por %p109, %p110
    %p112 = scmp.le.s32.totalorder 1, %s8
    %p113 = scmp.lt.s32.totalorder %s8, 5
    %p114 = pnand %p112, %p113
    %p115 = pneg %p114
    // Predicated region
    $region9: #{spectral_conv3d_forward.1} parent=5 // pred_check
      _
    $region10: #{spectral_conv3d_forward.1} parent=5 // pred_check_branch
      %117 = sbr.rel (%p114) target = $region12
    $region11: #{spectral_conv3d_forward.1} parent=5 // pred_region
      %s118 = ssub.s32 %s8, 1
    $region12: #{spectral_conv3d_forward.1} parent=5 // pred_fallthru
      _
    %p119 = scmp.lt.s32.totalorder %s8, 4
    // Predicated region
    $region13: #{spectral_conv3d_forward.1} parent=5 // pred_check
      %p120 = pneg %p119
    $region14: #{spectral_conv3d_forward.1} parent=5 // pred_check_branch
      %122 = sbr.rel (%p120) target = $region16
    $region15: #{spectral_conv3d_forward.1} parent=5 // pred_region
      // Predicated region
      $region17: #{spectral_conv3d_forward.1} parent=15 // pred_check
        %p123 = pneg %p42
      $region18: #{spectral_conv3d_forward.1} parent=15 // pred_check_branch
        %125 = sbr.rel (%p123) target = $region20
      $region19: #{spectral_conv3d_forward.1} parent=15 // pred_region
        %p126 = scmp.lt.s32.totalorder %s15, 3
        %s127 = scalar_select %p126, %s15, 3
        %p128 = scmp.lt.s32.totalorder %s16, 0
        %s129 = scalar_select %p128, %s16, 0
        %s130 = smul.addr %s127, 8
        %s131 = sadd.s32 %s129, %s130
        %s132 = smul.addr %s131, 8
        %s133 = scalar_lea.vmem %s0, %s132
      $region20: #{spectral_conv3d_forward.1} parent=15 // pred_fallthru
        _
      // Predicated region
      $region21: #{spectral_conv3d_forward.1} parent=15 // pred_check
        %p134 = pneg %p70
      $region22: #{spectral_conv3d_forward.1} parent=15 // pred_check_branch
        %136 = sbr.rel (%p134) target = $region24
      $region23: #{spectral_conv3d_forward.1} parent=15 // pred_region
        %p137 = scmp.lt.s32.totalorder %s15, 3
        %s138 = scalar_select %p137, %s15, 3
        %p139 = scmp.lt.s32.totalorder %s16, 0
        %s140 = scalar_select %p139, %s16, 0
        %s141 = smul.addr %s138, 4
        %s142 = sadd.s32 %s140, %s141
        %s143 = smul.addr %s142, 8
        %s144 = scalar_lea.vmem %s1, %s143
      $region24: #{spectral_conv3d_forward.1} parent=15 // pred_fallthru
        _
    $region16: #{spectral_conv3d_forward.1} parent=5 // pred_fallthru
      _
    %p145 = scmp.le.s32.totalorder 1, %s8
    %p146 = scmp.lt.s32.totalorder %s8, 5
    %p147 = pnand %p145, %p146
    %p148 = pneg %p147
    // Predicated region
    $region25: #{spectral_conv3d_forward.1} parent=5 // pred_check
      _
    $region26: #{spectral_conv3d_forward.1} parent=5 // pred_check_branch
      %150 = sbr.rel (%p147) target = $region28
    $region27: #{spectral_conv3d_forward.1} parent=5 // pred_region
      %s151 = ssub.s32 %s8, 1
      %p152 = scmp.lt.s32.totalorder %s17, 3
      %s153 = scalar_select %p152, %s17, 3
      %p154 = scmp.lt.s32.totalorder %s18, 0
      %s155 = scalar_select %p154, %s18, 0
      %s156 = smul.addr %s153, 8
      %s157 = sadd.s32 %s155, %s156
      %s158 = smul.addr %s157, 8
      %s159 = scalar_lea.vmem %s0, %s158
      %p160 = pneg %p48
      %p161 = pneg %p45
      %p162 = scmp.lt.s32.totalorder %s17, 3
      %s163 = scalar_select %p162, %s17, 3
      %p164 = scmp.lt.s32.totalorder %s18, 0
      %s165 = scalar_select %p164, %s18, 0
      %s166 = smul.addr %s163, 4
      %s167 = sadd.s32 %s165, %s166
      %s168 = smul.addr %s167, 8
      %s169 = scalar_lea.vmem %s1, %s168
      %p170 = pneg %p76
      %p171 = pneg %p73
      %p172 = pneg %p104
      %p173 = pneg %p101
      %p174 = scmp.lt.s32.totalorder %s17, 3
      %s175 = scalar_select %p174, %s17, 3
      %p176 = scmp.lt.s32.totalorder %s18, 0
      %s177 = scalar_select %p176, %s18, 0
      %s178 = smul.addr %s175, 2
      %s179 = sadd.s32 %s177, %s178
      %s180 = smul.addr %s179, 8
      %s181 = scalar_lea.vmem %s2, %s180
      %p182 = scmp.lt.s32.totalorder %s17, 3
      %s183 = scalar_select %p182, %s17, 3
      %p184 = scmp.lt.s32.totalorder %s18, 0
      %s185 = scalar_select %p184, %s18, 0
      %s186 = smul.addr %s183, 8
      %s187 = sadd.s32 %s185, %s186
      %s188 = smul.addr %s187, 8
      %s189 = scalar_lea.vmem %s0, %s188
      %p190 = scmp.lt.s32.totalorder %s17, 3
      %s191 = scalar_select %p190, %s17, 3
      %p192 = scmp.lt.s32.totalorder %s18, 0
      %s193 = scalar_select %p192, %s18, 0
      %s194 = smul.addr %s191, 4
      %s195 = sadd.s32 %s193, %s194
      %s196 = smul.addr %s195, 8
      %s197 = scalar_lea.vmem %s1, %s196
      %p198 = scmp.lt.s32.totalorder %s17, 3
      %s199 = scalar_select %p198, %s17, 3
      %p200 = scmp.lt.s32.totalorder %s18, 0
      %s201 = scalar_select %p200, %s18, 0
      %s202 = smul.addr %s199, 2
      %s203 = sadd.s32 %s201, %s202
      %s204 = smul.addr %s203, 8
      %s205 = scalar_lea.vmem %s2, %s204
      %v206 = vld [vmem:[%s189] sm:$0xff]
      %s207 = scalar_lea.vmem %s189, 32
      %v208 = vld [vmem:[%s207] sm:$0xff]
      %v209 = vld [vmem:[%s197] sm:$0xff]
      %s210 = scalar_lea.vmem %s197, 16
      %v211 = vld [vmem:[%s210] sm:$0xff]
      %v212 = vmul.f32 %v206, %v209
      %v213 = vmul.f32 %v208, %v211
      %v214 = vsub.f32 %v212, %v213
      %v215 = vadd.f32 %v214, 0.0
      %v216 = vmul.f32 %v206, %v211
      %v217 = vmul.f32 %v208, %v209
      %v218 = vadd.f32 %v216, %v217
      %v219 = vadd.f32 %v218, 0.0
      %v220 = vld [vmem:[%s189 + $0x8] sm:$0xff]
      %v221 = vld [vmem:[%s207 + $0x8] sm:$0xff]
      %v222 = vld [vmem:[%s197 + $0x8] sm:$0xff]
      %v223 = vld [vmem:[%s210 + $0x8] sm:$0xff]
      %v224 = vmul.f32 %v220, %v222
      %v225 = vmul.f32 %v221, %v223
      %v226 = vsub.f32 %v224, %v225
      %v227 = vadd.f32 %v215, %v226
      %v228 = vmul.f32 %v220, %v223
      %v229 = vmul.f32 %v221, %v222
      %v230 = vadd.f32 %v228, %v229
      %v231 = vadd.f32 %v219, %v230
      %v233 = vrot.slane %v227, 4
      %v235 = vadd.f32 %v227, %v233
      %v237 = vrot.slane %v231, 4
      %v239 = vadd.f32 %v231, %v237
      %v240 = vld [vmem:[%s189 + $0x10] sm:$0xff]
      %v241 = vld [vmem:[%s207 + $0x10] sm:$0xff]
      %v242 = vmul.f32 %v240, %v209
      %v243 = vmul.f32 %v241, %v211
      %v244 = vsub.f32 %v242, %v243
      %v245 = vadd.f32 %v244, 0.0
      %v246 = vmul.f32 %v240, %v211
      %v247 = vmul.f32 %v241, %v209
      %v248 = vadd.f32 %v246, %v247
      %v249 = vadd.f32 %v248, 0.0
      %v250 = vld [vmem:[%s189 + $0x18] sm:$0xff]
      %v251 = vld [vmem:[%s207 + $0x18] sm:$0xff]
      %v252 = vmul.f32 %v250, %v222
      %v253 = vmul.f32 %v251, %v223
      %v254 = vsub.f32 %v252, %v253
      %v255 = vadd.f32 %v245, %v254
      %v256 = vmul.f32 %v250, %v223
      %v257 = vmul.f32 %v251, %v222
      %v258 = vadd.f32 %v256, %v257
      %v259 = vadd.f32 %v249, %v258
      %v261 = vrot.slane %v255, 4
      %v263 = vadd.f32 %v255, %v261
      %v265 = vrot.slane %v259, 4
      %v267 = vadd.f32 %v259, %v265
      %v269 = vrot.slane %v263, 4
      %vm271 = vcmask 1043456
      %v272 = vsel %vm271, %v235, %v269
      %273 = vst [vmem:[%s205] sm:$0xff] %v272
      %v275 = vrot.slane %v267, 4
      %v277 = vsel %vm271, %v239, %v275
      %s278 = scalar_lea.vmem %s205, 8
      %279 = vst [vmem:[%s278] sm:$0xff] %v277
      %p280 = scmp.lt.s32.totalorder %s17, 3
      %s281 = scalar_select %p280, %s17, 3
      %p282 = scmp.lt.s32.totalorder %s18, 0
      %s283 = scalar_select %p282, %s18, 0
      %s284 = smul.addr %s281, 2
      %s285 = sadd.s32 %s283, %s284
      %s286 = smul.addr %s285, 8
      %s287 = scalar_lea.vmem %s2, %s286
      // Predicated region
      $region29: #{spectral_conv3d_forward.1} parent=27 // pred_check
        %p288 = pneg %p101
      $region30: #{spectral_conv3d_forward.1} parent=27 // pred_check_branch
        %290 = sbr.rel (%p288) target = $region32
      $region31: #{spectral_conv3d_forward.1} parent=27 // pred_region
        _
      $region32: #{spectral_conv3d_forward.1} parent=27 // pred_fallthru
        _
    $region28: #{spectral_conv3d_forward.1} parent=5 // pred_fallthru
      _
    %p291 = scmp.le.s32.totalorder 2, %s8
    // Predicated region
    $region33: #{spectral_conv3d_forward.1} parent=5 // pred_check
      %p292 = pneg %p291
    $region34: #{spectral_conv3d_forward.1} parent=5 // pred_check_branch
      %294 = sbr.rel (%p292) target = $region36
    $region35: #{spectral_conv3d_forward.1} parent=5 // pred_region
      %s295 = ssub.s32 %s8, 2
      // Predicated region
      $region37: #{spectral_conv3d_forward.1} parent=35 // pred_check
        %p296 = pneg %p107
      $region38: #{spectral_conv3d_forward.1} parent=35 // pred_check_branch
        %298 = sbr.rel (%p296) target = $region40
      $region39: #{spectral_conv3d_forward.1} parent=35 // pred_region
        %p299 = scmp.lt.s32.totalorder %s19, 3
        %s300 = scalar_select %p299, %s19, 3
        %p301 = scmp.lt.s32.totalorder %s20, 0
        %s302 = scalar_select %p301, %s20, 0
        %s303 = smul.addr %s300, 2
        %s304 = sadd.s32 %s302, %s303
        %s305 = smul.addr %s304, 8
        %s306 = scalar_lea.vmem %s2, %s305
      $region40: #{spectral_conv3d_forward.1} parent=35 // pred_fallthru
        _
    $region36: #{spectral_conv3d_forward.1} parent=5 // pred_fallthru
      _
  $region6: #{spectral_conv3d_forward.1} parent=0 // loop_footer
    %s12 = sadd.s32 1, %s8
  $region7: #{spectral_conv3d_forward.1} parent=0 // loop_footer_branch
    %7 = sbr.rel target = $region3
  $region8: #{spectral_conv3d_forward.1} parent=0 // loop_exit
    _

// kernel: reverse.1
$region0: #{reverse.1}
  #allocation0 [shape = 's32[1]{0}', space=sflag, size = 0x4, scoped, tag = 'scoped memory for reverse.1']
  %s0 = inlined_call_operand.vmem [shape: f32[2,4,16,16,3], index: 0, kind: input, shape index: {}]
  %s1 = inlined_call_operand.vmem [shape: f32[2,4,16,16,3], index: 1, kind: output, shape index: {}]
  %s2 = scalar_lea.vmem %s0, 32
  %v3 = vld [vmem:[%s2] sm:$0xff]
  %4 = vst [vmem:[%s1] sm:$0xff] %v3
  %s5 = scalar_lea.vmem %s0, 224
  %v6 = vld [vmem:[%s5] sm:$0xff]
  %s7 = scalar_lea.vmem %s1, 192
  %8 = vst [vmem:[%s7] sm:$0xff] %v6
  %s9 = scalar_lea.vmem %s0, 80
  %v10 = vld [vmem:[%s9] sm:$0xff]
  %s11 = scalar_lea.vmem %s1, 48
  %12 = vst [vmem:[%s11] sm:$0xff] %v10
  %s13 = scalar_lea.vmem %s0, 272
  %v14 = vld [vmem:[%s13] sm:$0xff]
  %s15 = scalar_lea.vmem %s1, 240
  %16 = vst [vmem:[%s15] sm:$0xff] %v14
  %s17 = scalar_lea.vmem %s0, 128
  %v18 = vld [vmem:[%s17] sm:$0xff]
  %s19 = scalar_lea.vmem %s1, 96
  %20 = vst [vmem:[%s19] sm:$0xff] %v18
  %s21 = scalar_lea.vmem %s0, 320
  %v22 = vld [vmem:[%s21] sm:$0xff]
  %s23 = scalar_lea.vmem %s1, 288
  %24 = vst [vmem:[%s23] sm:$0xff] %v22
  %s25 = scalar_lea.vmem %s0, 176
  %v26 = vld [vmem:[%s25] sm:$0xff]
  %s27 = scalar_lea.vmem %s1, 144
  %28 = vst [vmem:[%s27] sm:$0xff] %v26
  %s29 = scalar_lea.vmem %s0, 368
  %v30 = vld [vmem:[%s29] sm:$0xff]
  %s31 = scalar_lea.vmem %s1, 336
  %32 = vst [vmem:[%s31] sm:$0xff] %v30
  %s33 = scalar_lea.vmem %s0, 16
  %v34 = vld [vmem:[%s33] sm:$0xff]
  %s35 = scalar_lea.vmem %s1, 16
  %36 = vst [vmem:[%s35] sm:$0xff] %v34
  %s37 = scalar_lea.vmem %s0, 208
  %v38 = vld [vmem:[%s37] sm:$0xff]
  %s39 = scalar_lea.vmem %s1, 208
  %40 = vst [vmem:[%s39] sm:$0xff] %v38
  %s41 = scalar_lea.vmem %s0, 64
  %v42 = vld [vmem:[%s41] sm:$0xff]
  %s43 = scalar_lea.vmem %s1, 64
  %44 = vst [vmem:[%s43] sm:$0xff] %v42
  %s45 = scalar_lea.vmem %s0, 256
  %v46 = vld [vmem:[%s45] sm:$0xff]
  %s47 = scalar_lea.vmem %s1, 256
  %48 = vst [vmem:[%s47] sm:$0xff] %v46
  %s49 = scalar_lea.vmem %s0, 112
  %v50 = vld [vmem:[%s49] sm:$0xff]
  %s51 = scalar_lea.vmem %s1, 112
  %52 = vst [vmem:[%s51] sm:$0xff] %v50
  %s53 = scalar_lea.vmem %s0, 304
  %v54 = vld [vmem:[%s53] sm:$0xff]
  %s55 = scalar_lea.vmem %s1, 304
  %56 = vst [vmem:[%s55] sm:$0xff] %v54
  %s57 = scalar_lea.vmem %s0, 160
  %v58 = vld [vmem:[%s57] sm:$0xff]
  %s59 = scalar_lea.vmem %s1, 160
  %60 = vst [vmem:[%s59] sm:$0xff] %v58
  %s61 = scalar_lea.vmem %s0, 352
  %v62 = vld [vmem:[%s61] sm:$0xff]
  %s63 = scalar_lea.vmem %s1, 352
  %64 = vst [vmem:[%s63] sm:$0xff] %v62
  %v65 = vld [vmem:[%s0] sm:$0xff]
  %s66 = scalar_lea.vmem %s1, 32
  %67 = vst [vmem:[%s66] sm:$0xff] %v65
  %s68 = scalar_lea.vmem %s0, 192
  %v69 = vld [vmem:[%s68] sm:$0xff]
  %s70 = scalar_lea.vmem %s1, 224
  %71 = vst [vmem:[%s70] sm:$0xff] %v69
  %s72 = scalar_lea.vmem %s0, 48
  %v73 = vld [vmem:[%s72] sm:$0xff]
  %s74 = scalar_lea.vmem %s1, 80
  %75 = vst [vmem:[%s74] sm:$0xff] %v73
  %s76 = scalar_lea.vmem %s0, 240
  %v77 = vld [vmem:[%s76] sm:$0xff]
  %s78 = scalar_lea.vmem %s1, 272
  %79 = vst [vmem:[%s78] sm:$0xff] %v77
  %s80 = scalar_lea.vmem %s0, 96
  %v81 = vld [vmem:[%s80] sm:$0xff]
  %s82 = scalar_lea.vmem %s1, 128
  %83 = vst [vmem:[%s82] sm:$0xff] %v81
  %s84 = scalar_lea.vmem %s0, 288
  %v85 = vld [vmem:[%s84] sm:$0xff]
  %s86 = scalar_lea.vmem %s1, 320
  %87 = vst [vmem:[%s86] sm:$0xff] %v85
  %s88 = scalar_lea.vmem %s0, 144
  %v89 = vld [vmem:[%s88] sm:$0xff]
  %s90 = scalar_lea.vmem %s1, 176
  %91 = vst [vmem:[%s90] sm:$0xff] %v89
  %s92 = scalar_lea.vmem %s0, 336
  %v93 = vld [vmem:[%s92] sm:$0xff]
  %s94 = scalar_lea.vmem %s1, 368
  %95 = vst [vmem:[%s94] sm:$0xff] %v93
  %s96 = scalar_lea.vmem %s0, 40
  %v97 = vld [vmem:[%s96] sm:$0xff]
  %s98 = scalar_lea.vmem %s1, 8
  %99 = vst [vmem:[%s98] sm:$0xff] %v97
  %s100 = scalar_lea.vmem %s0, 232
  %v101 = vld [vmem:[%s100] sm:$0xff]
  %s102 = scalar_lea.vmem %s1, 200
  %103 = vst [vmem:[%s102] sm:$0xff] %v101
  %s104 = scalar_lea.vmem %s0, 88
  %v105 = vld [vmem:[%s104] sm:$0xff]
  %s106 = scalar_lea.vmem %s1, 56
  %107 = vst [vmem:[%s106] sm:$0xff] %v105
  %s108 = scalar_lea.vmem %s0, 280
  %v109 = vld [vmem:[%s108] sm:$0xff]
  %s110 = scalar_lea.vmem %s1, 248
  %111 = vst [vmem:[%s110] sm:$0xff] %v109
  %s112 = scalar_lea.vmem %s0, 136
  %v113 = vld [vmem:[%s112] sm:$0xff]
  %s114 = scalar_lea.vmem %s1, 104
  %115 = vst [vmem:[%s114] sm:$0xff] %v113
  %s116 = scalar_lea.vmem %s0, 328
  %v117 = vld [vmem:[%s116] sm:$0xff]
  %s118 = scalar_lea.vmem %s1, 296
  %119 = vst [vmem:[%s118] sm:$0xff] %v117
  %s120 = scalar_lea.vmem %s0, 184
  %v121 = vld [vmem:[%s120] sm:$0xff]
  %s122 = scalar_lea.vmem %s1, 152
  %123 = vst [vmem:[%s122] sm:$0xff] %v121
  %s124 = scalar_lea.vmem %s0, 376
  %v125 = vld [vmem:[%s124] sm:$0xff]
  %s126 = scalar_lea.vmem %s1, 344
  %127 = vst [vmem:[%s126] sm:$0xff] %v125
  %s128 = scalar_lea.vmem %s0, 24
  %v129 = vld [vmem:[%s128] sm:$0xff]
  %s130 = scalar_lea.vmem %s1, 24
  %131 = vst [vmem:[%s130] sm:$0xff] %v129
  %s132 = scalar_lea.vmem %s0, 216
  %v133 = vld [vmem:[%s132] sm:$0xff]
  %s134 = scalar_lea.vmem %s1, 216
  %135 = vst [vmem:[%s134] sm:$0xff] %v133
  %s136 = scalar_lea.vmem %s0, 72
  %v137 = vld [vmem:[%s136] sm:$0xff]
  %s138 = scalar_lea.vmem %s1, 72
  %139 = vst [vmem:[%s138] sm:$0xff] %v137
  %s140 = scalar_lea.vmem %s0, 264
  %v141 = vld [vmem:[%s140] sm:$0xff]
  %s142 = scalar_lea.vmem %s1, 264
  %143 = vst [vmem:[%s142] sm:$0xff] %v141
  %s144 = scalar_lea.vmem %s0, 120
  %v145 = vld [vmem:[%s144] sm:$0xff]
  %s146 = scalar_lea.vmem %s1, 120
  %147 = vst [vmem:[%s146] sm:$0xff] %v145
  %s148 = scalar_lea.vmem %s0, 312
  %v149 = vld [vmem:[%s148] sm:$0xff]
  %s150 = scalar_lea.vmem %s1, 312
  %151 = vst [vmem:[%s150] sm:$0xff] %v149
  %s152 = scalar_lea.vmem %s0, 168
  %v153 = vld [vmem:[%s152] sm:$0xff]
  %s154 = scalar_lea.vmem %s1, 168
  %155 = vst [vmem:[%s154] sm:$0xff] %v153
  %s156 = scalar_lea.vmem %s0, 360
  %v157 = vld [vmem:[%s156] sm:$0xff]
  %s158 = scalar_lea.vmem %s1, 360
  %159 = vst [vmem:[%s158] sm:$0xff] %v157
  %s160 = scalar_lea.vmem %s0, 8
  %v161 = vld [vmem:[%s160] sm:$0xff]
  %s162 = scalar_lea.vmem %s1, 40
  %163 = vst [vmem:[%s162] sm:$0xff] %v161
  %s164 = scalar_lea.vmem %s0, 200
  %v165 = vld [vmem:[%s164] sm:$0xff]
  %s166 = scalar_lea.vmem %s1, 232
  %167 = vst [vmem:[%s166] sm:$0xff] %v165
  %s168 = scalar_lea.vmem %s0, 56
  %v169 = vld [vmem:[%s168] sm:$0xff]
  %s170 = scalar_lea.vmem %s1, 88
  %171 = vst [vmem:[%s170] sm:$0xff] %v169
  %s172 = scalar_lea.vmem %s0, 248
  %v173 = vld [vmem:[%s172] sm:$0xff]
  %s174 = scalar_lea.vmem %s1, 280
  %175 = vst [vmem:[%s174] sm:$0xff] %v173
  %s176 = scalar_lea.vmem %s0, 104
  %v177 = vld [vmem:[%s176] sm:$0xff]
  %s178 = scalar_lea.vmem %s1, 136
  %179 = vst [vmem:[%s178] sm:$0xff] %v177
  %s180 = scalar_lea.vmem %s0, 296
  %v181 = vld [vmem:[%s180] sm:$0xff]
  %s182 = scalar_lea.vmem %s1, 328
  %183 = vst [vmem:[%s182] sm:$0xff] %v181
  %s184 = scalar_lea.vmem %s0, 152
  %v185 = vld [vmem:[%s184] sm:$0xff]
  %s186 = scalar_lea.vmem %s1, 184
  %187 = vst [vmem:[%s186] sm:$0xff] %v185
  %s188 = scalar_lea.vmem %s0, 344
  %v189 = vld [vmem:[%s188] sm:$0xff]
  %s190 = scalar_lea.vmem %s1, 376
  %191 = vst [vmem:[%s190] sm:$0xff] %v189

</llo_original>
